<compile_context>
chip_gen: v6e
topology: v6e:2x2x1
jax: 0.10.0
libtpu: 0.0.40
codegen_flags: <defaults>
</compile_context>

<pallas_src>
import functools

import jax
import jax.numpy as jnp
from jax.experimental import pallas as pl
from jax.experimental.pallas import tpu as pltpu


def generator_kernel(x_ref, g_all_ref, a_node_ref, mask_ref,
                     wx_ref, bx_ref, ur_ref, wout_ref, out_ref,
                     *, depth, hidden_size):
    H = hidden_size
    x = x_ref[...]            # (M, H)         message input features
    g_all = g_all_ref[...]    # (K*M, M)       stacked per-slot one-hot gather matrices
    a_node = a_node_ref[...]  # (N, M)         node <- message count matrix
    mask = mask_ref[...]      # (M, 1)         zeroes the padding message (row 0)
    wx = wx_ref[...]          # (H, 3H) = [W_r | W_z[:H] | W_h[:H]]
    bx = bx_ref[...]          # (1, 3H) = [b_r | b_z | b_h]
    ur = ur_ref[...]          # (H, H)   U_r (bias=False)
    w_out = wout_ref[...]     # (H, 2H) = [W_z[H:] | W_h[H:]]

    M = x.shape[0]
    K = g_all.shape[0] // M

    # Fused x-projections (loop-invariant): one matmul instead of three.
    xproj = jnp.dot(x, wx, preferred_element_type=jnp.float32) + bx   # (M, 3H)
    r1 = xproj[:, :H]            # W_r(x) + b_r
    xz = xproj[:, H:2 * H]       # W_z(x | .) x-part + b_z
    xh = xproj[:, 2 * H:]        # W_h(x | .) x-part + b_h

    def gru_step(h):
        # One matmul produces h_nei and U_r(h_nei) for every neighbor slot.
        hU = jnp.dot(h, ur, preferred_element_type=jnp.float32)       # (M, H)
        hhU = jnp.concatenate([h, hU], axis=-1)                       # (M, 2H)
        both = jnp.dot(g_all, hhU, preferred_element_type=jnp.float32)  # (K*M, 2H)

        sum_h = jnp.zeros((M, H), jnp.float32)
        sum_gated = jnp.zeros((M, H), jnp.float32)
        for j in range(K):                       # static, tiny — pure VPU/EUP work
            blk = both[j * M:(j + 1) * M]
            hj = blk[:, :H]
            rj = jax.nn.sigmoid(r1 + blk[:, H:])
            sum_h = sum_h + hj
            sum_gated = sum_gated + rj * hj

        # Fused z / pre_h projection: one matmul instead of two.
        stacked = jnp.concatenate([sum_h, sum_gated], axis=0)         # (2M, H)
        proj = jnp.dot(stacked, w_out, preferred_element_type=jnp.float32)  # (2M, 2H)
        z = jax.nn.sigmoid(xz + proj[:M, :H])
        pre_h = jnp.tanh(xh + proj[M:, H:])
        new_h = (1.0 - z) * sum_h + z * pre_h
        return new_h * mask

    h = jnp.zeros((M, H), jnp.float32)
    if depth >= 1:
        # First step with h == 0 simplifies exactly: sum_h = sum_gated = 0.
        h = (jax.nn.sigmoid(xz) * jnp.tanh(xh)) * mask
    for _ in range(depth - 1):   # fully unrolled static loop
        h = gru_step(h)

    # mess_nei.sum(dim=1) == A_node @ h : single matmul, lane-dense output.
    out_ref[...] = jnp.dot(a_node, h, preferred_element_type=jnp.float32)


def generator_forward(params, fnode_idx, fmess_idx, mess_graph, node_graph, scope, depth):
    emb = params["embedding"]             # (vocab, H)
    fnode = emb[fnode_idx]                # embedding lookup (glue, JAX)
    x = fnode[fmess_idx]                  # index_select_ND(fnode, 0, fmess) (glue, JAX)
    H = emb.shape[1]
    M = x.shape[0]
    N = fnode.shape[0]
    K = mess_graph.shape[1]
    Kn = node_graph.shape[1]

    mask = jnp.ones((M, 1), jnp.float32).at[0, 0].set(0.0)

    # Loop-invariant gather / aggregation matrices, built once outside the kernel.
    # g_all[j*M + i] = one_hot(mess_graph[i, j]); a_node[n, m] = #{j : node_graph[n, j] == m}
    g_all = jax.nn.one_hot(mess_graph.T.reshape(K * M), M, dtype=jnp.float32)   # (K*M, M)
    a_node = jax.nn.one_hot(node_graph, M, dtype=jnp.float32).sum(axis=1)       # (N, M)

    # Fused weights (stored (in, out) == torch weight.T).
    wz, bz = params["W_z"], params["b_z"]
    wr, br = params["W_r"], params["b_r"]
    wh, bh = params["W_h"], params["b_h"]
    ur = params["U_r"]
    wx = jnp.concatenate([wr, wz[:H], wh[:H]], axis=1)     # (H, 3H)
    bx = jnp.concatenate([br, bz, bh], axis=1)             # (1, 3H)
    w_out = jnp.concatenate([wz[H:], wh[H:]], axis=1)      # (H, 2H)

    # Advisory cost estimate for XLA's scheduler.
    flops = int(
        2 * M * H * 3 * H
        + depth * (2 * M * H * H + 2 * (K * M) * M * (2 * H)
                   + 2 * (2 * M) * H * (2 * H) + 8 * M * H)
        + 2 * N * M * H)
    transcendentals = int(depth * (K + 2) * M * H)
    bytes_accessed = int(4 * (x.size + g_all.size + a_node.size + mask.size
                              + wx.size + bx.size + ur.size + w_out.size + N * H))

    kernel = functools.partial(generator_kernel, depth=depth, hidden_size=H)
    vmem = pl.BlockSpec(memory_space=pltpu.MemorySpace.VMEM)
    mess_sum = pl.pallas_call(
        kernel,
        out_shape=jax.ShapeDtypeStruct((N, H), jnp.float32),
        in_specs=[vmem] * 8,
        out_specs=vmem,
        cost_estimate=pl.CostEstimate(flops=flops,
                                      transcendentals=transcendentals,
                                      bytes_accessed=bytes_accessed),
    )(x, g_all, a_node, mask, wx, bx, ur, w_out)

    # node_vecs = concat([fnode, mess_nei.sum(1)], -1); root gather is static Python glue.
    node_vecs = jnp.concatenate([fnode, mess_sum], axis=-1)
    return jnp.stack([node_vecs[st] for st, _le in scope], axis=0)


def generator_ref(params, fnode_idx, fmess_idx, mess_graph, node_graph, scope, depth):
    """Pure-JAX reference matching the PyTorch forward semantics."""
    emb = params["embedding"]
    fnode = emb[fnode_idx]
    x = fnode[fmess_idx]
    H = emb.shape[1]
    num_mess = x.shape[0]
    mask = jnp.ones((num_mess, 1), jnp.float32).at[0, 0].set(0.0)
    Wz, bz = params["W_z"], params["b_z"]
    Wr, br = params["W_r"], params["b_r"]
    Ur = params["U_r"]
    Wh, bh = params["W_h"], params["b_h"]
    h = jnp.zeros((num_mess, H), jnp.float32)
    for _ in range(depth):
        h_nei = h[mess_graph]                          # (M, K, H)
        sum_h = h_nei.sum(axis=1)
        z = jax.nn.sigmoid(jnp.concatenate([x, sum_h], -1) @ Wz + bz)
        r1 = (x @ Wr + br)[:, None, :]
        r2 = h_nei @ Ur
        r = jax.nn.sigmoid(r1 + r2)
        sum_gated = (r * h_nei).sum(axis=1)
        pre_h = jnp.tanh(jnp.concatenate([x, sum_gated], -1) @ Wh + bh)
        h = ((1.0 - z) * sum_h + z * pre_h) * mask
    mess_nei_sum = h[node_graph].sum(axis=1)
    node_vecs = jnp.concatenate([fnode, mess_nei_sum], axis=-1)
    return jnp.stack([node_vecs[st] for st, _le in scope], axis=0)


def init_params(key, vocab_size, hidden_size):
    H = hidden_size
    ks = jax.random.split(key, 8)
    s = 0.1
    return {
        "embedding": jax.random.normal(ks[0], (vocab_size, H), jnp.float32) * s,
        # Linear weights stored as (in, out) == torch weight.T
        "W_z": jax.random.normal(ks[1], (2 * H, H), jnp.float32) * s,
        "b_z": jax.random.normal(ks[2], (1, H), jnp.float32) * s,
        "W_r": jax.random.normal(ks[3], (H, H), jnp.float32) * s,
        "b_r": jax.random.normal(ks[4], (1, H), jnp.float32) * s,
        "U_r": jax.random.normal(ks[5], (H, H), jnp.float32) * s,  # bias=False in torch
        "W_h": jax.random.normal(ks[6], (2 * H, H), jnp.float32) * s,
        "b_h": jax.random.normal(ks[7], (1, H), jnp.float32) * s,
    }


if __name__ == "__main__":
    hidden_size = 32
    vocab_size = 20
    num_nodes = 6
    num_mess = 9          # message slot 0 is the padding slot (h[0] masked to 0)
    max_nei = 4
    max_nei_node = 5
    depth = 3
    scope = [(0, 3), (3, 3)]   # roots at node 0 and node 3

    key = jax.random.PRNGKey(0)
    kp, k1, k2, k3, k4 = jax.random.split(key, 5)
    params = init_params(kp, vocab_size, hidden_size)

    fnode_idx = jax.random.randint(k1, (num_nodes,), 0, vocab_size, jnp.int32)
    fmess_idx = jax.random.randint(k2, (num_mess,), 0, num_nodes, jnp.int32)
    mess_graph = jax.random.randint(k3, (num_mess, max_nei), 0, num_mess, jnp.int32)
    node_graph = jax.random.randint(k4, (num_nodes, max_nei_node), 0, num_mess, jnp.int32)
    # slot 0 is padding: no incoming neighbors, and it pads neighbor lists.
    mess_graph = mess_graph.at[0, :].set(0)
    mess_graph = mess_graph.at[:, -1].set(0)
    node_graph = node_graph.at[:, -1].set(0)

    out = generator_forward(params, fnode_idx, fmess_idx, mess_graph, node_graph, scope, depth)
    out = jax.block_until_ready(out)

    ref = generator_ref(params, fnode_idx, fmess_idx, mess_graph, node_graph, scope, depth)
    assert out.shape == (len(scope), 2 * hidden_size), out.shape
    assert jnp.allclose(out, ref, atol=1e-5, rtol=1e-5), float(jnp.max(jnp.abs(out - ref)))

    print("KERNEL_OK")
</pallas_src>

<mosaic_0001>
module attributes {stable_mosaic.version = 11 : i64} {
  func.func @generator_kernel(%arg0: memref<9x32xf32, #tpu.memory_space<vmem>>, %arg1: memref<36x9xf32, #tpu.memory_space<vmem>>, %arg2: memref<6x9xf32, #tpu.memory_space<vmem>>, %arg3: memref<9x1xf32, #tpu.memory_space<vmem>>, %arg4: memref<32x96xf32, #tpu.memory_space<vmem>>, %arg5: memref<1x96xf32, #tpu.memory_space<vmem>>, %arg6: memref<32x32xf32, #tpu.memory_space<vmem>>, %arg7: memref<32x64xf32, #tpu.memory_space<vmem>>, %arg8: memref<6x32xf32, #tpu.memory_space<vmem>>) attributes {dimension_semantics = [], scalar_prefetch = 0 : i64, scratch_operands = 0 : i64, tpu.core_type = #tpu.core_type<tc>} {
    %c0 = arith.constant 0 : index
    %c0_0 = arith.constant 0 : index
    %0 = vector.load %arg0[%c0, %c0_0] : memref<9x32xf32, #tpu.memory_space<vmem>>, vector<9x32xf32>
    %c0_1 = arith.constant 0 : index
    %c0_2 = arith.constant 0 : index
    %1 = vector.load %arg1[%c0_1, %c0_2] : memref<36x9xf32, #tpu.memory_space<vmem>>, vector<36x9xf32>
    %c0_3 = arith.constant 0 : index
    %c0_4 = arith.constant 0 : index
    %2 = vector.load %arg2[%c0_3, %c0_4] : memref<6x9xf32, #tpu.memory_space<vmem>>, vector<6x9xf32>
    %c0_5 = arith.constant 0 : index
    %c0_6 = arith.constant 0 : index
    %3 = vector.load %arg3[%c0_5, %c0_6] : memref<9x1xf32, #tpu.memory_space<vmem>>, vector<9x1xf32>
    %c0_7 = arith.constant 0 : index
    %c0_8 = arith.constant 0 : index
    %4 = vector.load %arg4[%c0_7, %c0_8] : memref<32x96xf32, #tpu.memory_space<vmem>>, vector<32x96xf32>
    %c0_9 = arith.constant 0 : index
    %c0_10 = arith.constant 0 : index
    %5 = vector.load %arg5[%c0_9, %c0_10] : memref<1x96xf32, #tpu.memory_space<vmem>>, vector<1x96xf32>
    %c0_11 = arith.constant 0 : index
    %c0_12 = arith.constant 0 : index
    %6 = vector.load %arg6[%c0_11, %c0_12] : memref<32x32xf32, #tpu.memory_space<vmem>>, vector<32x32xf32>
    %c0_13 = arith.constant 0 : index
    %c0_14 = arith.constant 0 : index
    %7 = vector.load %arg7[%c0_13, %c0_14] : memref<32x64xf32, #tpu.memory_space<vmem>>, vector<32x64xf32>
    %cst = arith.constant dense<0.000000e+00> : vector<9x96xf32>
    %8 = tpu.matmul %0, %4, %cst {dimension_numbers = #tpu.dot_dimension_numbers<[1], [0], [0], [1], [0, 0, 1, 1], [], []>} : vector<9x32xf32>, vector<32x96xf32>, vector<9x96xf32> -> vector<9x96xf32>
    %9 = vector.broadcast %5 : vector<1x96xf32> to vector<9x96xf32>
    %10 = arith.addf %8, %9 : vector<9x96xf32>
    %11 = vector.extract_strided_slice %10 {offsets = [0, 0], sizes = [9, 32], strides = [1, 1]} : vector<9x96xf32> to vector<9x32xf32>
    %12 = vector.extract_strided_slice %10 {offsets = [0, 32], sizes = [9, 32], strides = [1, 1]} : vector<9x96xf32> to vector<9x32xf32>
    %13 = vector.extract_strided_slice %10 {offsets = [0, 64], sizes = [9, 32], strides = [1, 1]} : vector<9x96xf32> to vector<9x32xf32>
    %14 = arith.negf %12 : vector<9x32xf32>
    %15 = math.exp %14 : vector<9x32xf32>
    %cst_15 = arith.constant 1.000000e+00 : f32
    %16 = vector.broadcast %cst_15 : f32 to vector<9x32xf32>
    %17 = arith.addf %16, %15 : vector<9x32xf32>
    %18 = arith.divf %16, %17 : vector<9x32xf32>
    %19 = math.tanh %13 : vector<9x32xf32>
    %20 = arith.mulf %18, %19 : vector<9x32xf32>
    %21 = vector.broadcast %3 : vector<9x1xf32> to vector<9x32xf32>
    %22 = arith.mulf %20, %21 : vector<9x32xf32>
    %cst_16 = arith.constant dense<0.000000e+00> : vector<9x32xf32>
    %23 = tpu.matmul %22, %6, %cst_16 {dimension_numbers = #tpu.dot_dimension_numbers<[1], [0], [0], [1], [0, 0, 1, 1], [], []>} : vector<9x32xf32>, vector<32x32xf32>, vector<9x32xf32> -> vector<9x32xf32>
    %24 = tpu.concatenate %22, %23 in 1 : vector<9x32xf32>, vector<9x32xf32> -> vector<9x64xf32>
    %cst_17 = arith.constant dense<0.000000e+00> : vector<36x64xf32>
    %25 = tpu.matmul %1, %24, %cst_17 {dimension_numbers = #tpu.dot_dimension_numbers<[1], [0], [0], [1], [0, 0, 1, 1], [], []>} : vector<36x9xf32>, vector<9x64xf32>, vector<36x64xf32> -> vector<36x64xf32>
    %cst_18 = arith.constant 0.000000e+00 : f32
    %26 = vector.broadcast %cst_18 : f32 to vector<9x32xf32>
    %cst_19 = arith.constant 0.000000e+00 : f32
    %27 = vector.broadcast %cst_19 : f32 to vector<9x32xf32>
    %28 = vector.extract_strided_slice %25 {offsets = [0, 0], sizes = [9, 64], strides = [1, 1]} : vector<36x64xf32> to vector<9x64xf32>
    %29 = vector.extract_strided_slice %28 {offsets = [0, 0], sizes = [9, 32], strides = [1, 1]} : vector<9x64xf32> to vector<9x32xf32>
    %30 = vector.extract_strided_slice %28 {offsets = [0, 32], sizes = [9, 32], strides = [1, 1]} : vector<9x64xf32> to vector<9x32xf32>
    %31 = arith.addf %11, %30 : vector<9x32xf32>
    %32 = arith.negf %31 : vector<9x32xf32>
    %33 = math.exp %32 : vector<9x32xf32>
    %cst_20 = arith.constant 1.000000e+00 : f32
    %34 = vector.broadcast %cst_20 : f32 to vector<9x32xf32>
    %35 = arith.addf %34, %33 : vector<9x32xf32>
    %36 = arith.divf %34, %35 : vector<9x32xf32>
    %37 = arith.addf %26, %29 : vector<9x32xf32>
    %38 = arith.mulf %36, %29 : vector<9x32xf32>
    %39 = arith.addf %27, %38 : vector<9x32xf32>
    %40 = vector.extract_strided_slice %25 {offsets = [9, 0], sizes = [9, 64], strides = [1, 1]} : vector<36x64xf32> to vector<9x64xf32>
    %41 = vector.extract_strided_slice %40 {offsets = [0, 0], sizes = [9, 32], strides = [1, 1]} : vector<9x64xf32> to vector<9x32xf32>
    %42 = vector.extract_strided_slice %40 {offsets = [0, 32], sizes = [9, 32], strides = [1, 1]} : vector<9x64xf32> to vector<9x32xf32>
    %43 = arith.addf %11, %42 : vector<9x32xf32>
    %44 = arith.negf %43 : vector<9x32xf32>
    %45 = math.exp %44 : vector<9x32xf32>
    %cst_21 = arith.constant 1.000000e+00 : f32
    %46 = vector.broadcast %cst_21 : f32 to vector<9x32xf32>
    %47 = arith.addf %46, %45 : vector<9x32xf32>
    %48 = arith.divf %46, %47 : vector<9x32xf32>
    %49 = arith.addf %37, %41 : vector<9x32xf32>
    %50 = arith.mulf %48, %41 : vector<9x32xf32>
    %51 = arith.addf %39, %50 : vector<9x32xf32>
    %52 = vector.extract_strided_slice %25 {offsets = [18, 0], sizes = [9, 64], strides = [1, 1]} : vector<36x64xf32> to vector<9x64xf32>
    %53 = vector.extract_strided_slice %52 {offsets = [0, 0], sizes = [9, 32], strides = [1, 1]} : vector<9x64xf32> to vector<9x32xf32>
    %54 = vector.extract_strided_slice %52 {offsets = [0, 32], sizes = [9, 32], strides = [1, 1]} : vector<9x64xf32> to vector<9x32xf32>
    %55 = arith.addf %11, %54 : vector<9x32xf32>
    %56 = arith.negf %55 : vector<9x32xf32>
    %57 = math.exp %56 : vector<9x32xf32>
    %cst_22 = arith.constant 1.000000e+00 : f32
    %58 = vector.broadcast %cst_22 : f32 to vector<9x32xf32>
    %59 = arith.addf %58, %57 : vector<9x32xf32>
    %60 = arith.divf %58, %59 : vector<9x32xf32>
    %61 = arith.addf %49, %53 : vector<9x32xf32>
    %62 = arith.mulf %60, %53 : vector<9x32xf32>
    %63 = arith.addf %51, %62 : vector<9x32xf32>
    %64 = vector.extract_strided_slice %25 {offsets = [27, 0], sizes = [9, 64], strides = [1, 1]} : vector<36x64xf32> to vector<9x64xf32>
    %65 = vector.extract_strided_slice %64 {offsets = [0, 0], sizes = [9, 32], strides = [1, 1]} : vector<9x64xf32> to vector<9x32xf32>
    %66 = vector.extract_strided_slice %64 {offsets = [0, 32], sizes = [9, 32], strides = [1, 1]} : vector<9x64xf32> to vector<9x32xf32>
    %67 = arith.addf %11, %66 : vector<9x32xf32>
    %68 = arith.negf %67 : vector<9x32xf32>
    %69 = math.exp %68 : vector<9x32xf32>
    %cst_23 = arith.constant 1.000000e+00 : f32
    %70 = vector.broadcast %cst_23 : f32 to vector<9x32xf32>
    %71 = arith.addf %70, %69 : vector<9x32xf32>
    %72 = arith.divf %70, %71 : vector<9x32xf32>
    %73 = arith.addf %61, %65 : vector<9x32xf32>
    %74 = arith.mulf %72, %65 : vector<9x32xf32>
    %75 = arith.addf %63, %74 : vector<9x32xf32>
    %76 = tpu.concatenate %73, %75 in 0 : vector<9x32xf32>, vector<9x32xf32> -> vector<18x32xf32>
    %cst_24 = arith.constant dense<0.000000e+00> : vector<18x64xf32>
    %77 = tpu.matmul %76, %7, %cst_24 {dimension_numbers = #tpu.dot_dimension_numbers<[1], [0], [0], [1], [0, 0, 1, 1], [], []>} : vector<18x32xf32>, vector<32x64xf32>, vector<18x64xf32> -> vector<18x64xf32>
    %78 = vector.extract_strided_slice %77 {offsets = [0, 0], sizes = [9, 32], strides = [1, 1]} : vector<18x64xf32> to vector<9x32xf32>
    %79 = arith.addf %12, %78 : vector<9x32xf32>
    %80 = arith.negf %79 : vector<9x32xf32>
    %81 = math.exp %80 : vector<9x32xf32>
    %cst_25 = arith.constant 1.000000e+00 : f32
    %82 = vector.broadcast %cst_25 : f32 to vector<9x32xf32>
    %83 = arith.addf %82, %81 : vector<9x32xf32>
    %84 = arith.divf %82, %83 : vector<9x32xf32>
    %85 = vector.extract_strided_slice %77 {offsets = [9, 32], sizes = [9, 32], strides = [1, 1]} : vector<18x64xf32> to vector<9x32xf32>
    %86 = arith.addf %13, %85 : vector<9x32xf32>
    %87 = math.tanh %86 : vector<9x32xf32>
    %cst_26 = arith.constant 1.000000e+00 : f32
    %88 = vector.broadcast %cst_26 : f32 to vector<9x32xf32>
    %89 = arith.subf %88, %84 : vector<9x32xf32>
    %90 = arith.mulf %89, %73 : vector<9x32xf32>
    %91 = arith.mulf %84, %87 : vector<9x32xf32>
    %92 = arith.addf %90, %91 : vector<9x32xf32>
    %93 = vector.broadcast %3 : vector<9x1xf32> to vector<9x32xf32>
    %94 = arith.mulf %92, %93 : vector<9x32xf32>
    %cst_27 = arith.constant dense<0.000000e+00> : vector<9x32xf32>
    %95 = tpu.matmul %94, %6, %cst_27 {dimension_numbers = #tpu.dot_dimension_numbers<[1], [0], [0], [1], [0, 0, 1, 1], [], []>} : vector<9x32xf32>, vector<32x32xf32>, vector<9x32xf32> -> vector<9x32xf32>
    %96 = tpu.concatenate %94, %95 in 1 : vector<9x32xf32>, vector<9x32xf32> -> vector<9x64xf32>
    %cst_28 = arith.constant dense<0.000000e+00> : vector<36x64xf32>
    %97 = tpu.matmul %1, %96, %cst_28 {dimension_numbers = #tpu.dot_dimension_numbers<[1], [0], [0], [1], [0, 0, 1, 1], [], []>} : vector<36x9xf32>, vector<9x64xf32>, vector<36x64xf32> -> vector<36x64xf32>
    %cst_29 = arith.constant 0.000000e+00 : f32
    %98 = vector.broadcast %cst_29 : f32 to vector<9x32xf32>
    %cst_30 = arith.constant 0.000000e+00 : f32
    %99 = vector.broadcast %cst_30 : f32 to vector<9x32xf32>
    %100 = vector.extract_strided_slice %97 {offsets = [0, 0], sizes = [9, 64], strides = [1, 1]} : vector<36x64xf32> to vector<9x64xf32>
    %101 = vector.extract_strided_slice %100 {offsets = [0, 0], sizes = [9, 32], strides = [1, 1]} : vector<9x64xf32> to vector<9x32xf32>
    %102 = vector.extract_strided_slice %100 {offsets = [0, 32], sizes = [9, 32], strides = [1, 1]} : vector<9x64xf32> to vector<9x32xf32>
    %103 = arith.addf %11, %102 : vector<9x32xf32>
    %104 = arith.negf %103 : vector<9x32xf32>
    %105 = math.exp %104 : vector<9x32xf32>
    %cst_31 = arith.constant 1.000000e+00 : f32
    %106 = vector.broadcast %cst_31 : f32 to vector<9x32xf32>
    %107 = arith.addf %106, %105 : vector<9x32xf32>
    %108 = arith.divf %106, %107 : vector<9x32xf32>
    %109 = arith.addf %98, %101 : vector<9x32xf32>
    %110 = arith.mulf %108, %101 : vector<9x32xf32>
    %111 = arith.addf %99, %110 : vector<9x32xf32>
    %112 = vector.extract_strided_slice %97 {offsets = [9, 0], sizes = [9, 64], strides = [1, 1]} : vector<36x64xf32> to vector<9x64xf32>
    %113 = vector.extract_strided_slice %112 {offsets = [0, 0], sizes = [9, 32], strides = [1, 1]} : vector<9x64xf32> to vector<9x32xf32>
    %114 = vector.extract_strided_slice %112 {offsets = [0, 32], sizes = [9, 32], strides = [1, 1]} : vector<9x64xf32> to vector<9x32xf32>
    %115 = arith.addf %11, %114 : vector<9x32xf32>
    %116 = arith.negf %115 : vector<9x32xf32>
    %117 = math.exp %116 : vector<9x32xf32>
    %cst_32 = arith.constant 1.000000e+00 : f32
    %118 = vector.broadcast %cst_32 : f32 to vector<9x32xf32>
    %119 = arith.addf %118, %117 : vector<9x32xf32>
    %120 = arith.divf %118, %119 : vector<9x32xf32>
    %121 = arith.addf %109, %113 : vector<9x32xf32>
    %122 = arith.mulf %120, %113 : vector<9x32xf32>
    %123 = arith.addf %111, %122 : vector<9x32xf32>
    %124 = vector.extract_strided_slice %97 {offsets = [18, 0], sizes = [9, 64], strides = [1, 1]} : vector<36x64xf32> to vector<9x64xf32>
    %125 = vector.extract_strided_slice %124 {offsets = [0, 0], sizes = [9, 32], strides = [1, 1]} : vector<9x64xf32> to vector<9x32xf32>
    %126 = vector.extract_strided_slice %124 {offsets = [0, 32], sizes = [9, 32], strides = [1, 1]} : vector<9x64xf32> to vector<9x32xf32>
    %127 = arith.addf %11, %126 : vector<9x32xf32>
    %128 = arith.negf %127 : vector<9x32xf32>
    %129 = math.exp %128 : vector<9x32xf32>
    %cst_33 = arith.constant 1.000000e+00 : f32
    %130 = vector.broadcast %cst_33 : f32 to vector<9x32xf32>
    %131 = arith.addf %130, %129 : vector<9x32xf32>
    %132 = arith.divf %130, %131 : vector<9x32xf32>
    %133 = arith.addf %121, %125 : vector<9x32xf32>
    %134 = arith.mulf %132, %125 : vector<9x32xf32>
    %135 = arith.addf %123, %134 : vector<9x32xf32>
    %136 = vector.extract_strided_slice %97 {offsets = [27, 0], sizes = [9, 64], strides = [1, 1]} : vector<36x64xf32> to vector<9x64xf32>
    %137 = vector.extract_strided_slice %136 {offsets = [0, 0], sizes = [9, 32], strides = [1, 1]} : vector<9x64xf32> to vector<9x32xf32>
    %138 = vector.extract_strided_slice %136 {offsets = [0, 32], sizes = [9, 32], strides = [1, 1]} : vector<9x64xf32> to vector<9x32xf32>
    %139 = arith.addf %11, %138 : vector<9x32xf32>
    %140 = arith.negf %139 : vector<9x32xf32>
    %141 = math.exp %140 : vector<9x32xf32>
    %cst_34 = arith.constant 1.000000e+00 : f32
    %142 = vector.broadcast %cst_34 : f32 to vector<9x32xf32>
    %143 = arith.addf %142, %141 : vector<9x32xf32>
    %144 = arith.divf %142, %143 : vector<9x32xf32>
    %145 = arith.addf %133, %137 : vector<9x32xf32>
    %146 = arith.mulf %144, %137 : vector<9x32xf32>
    %147 = arith.addf %135, %146 : vector<9x32xf32>
    %148 = tpu.concatenate %145, %147 in 0 : vector<9x32xf32>, vector<9x32xf32> -> vector<18x32xf32>
    %cst_35 = arith.constant dense<0.000000e+00> : vector<18x64xf32>
    %149 = tpu.matmul %148, %7, %cst_35 {dimension_numbers = #tpu.dot_dimension_numbers<[1], [0], [0], [1], [0, 0, 1, 1], [], []>} : vector<18x32xf32>, vector<32x64xf32>, vector<18x64xf32> -> vector<18x64xf32>
    %150 = vector.extract_strided_slice %149 {offsets = [0, 0], sizes = [9, 32], strides = [1, 1]} : vector<18x64xf32> to vector<9x32xf32>
    %151 = arith.addf %12, %150 : vector<9x32xf32>
    %152 = arith.negf %151 : vector<9x32xf32>
    %153 = math.exp %152 : vector<9x32xf32>
    %cst_36 = arith.constant 1.000000e+00 : f32
    %154 = vector.broadcast %cst_36 : f32 to vector<9x32xf32>
    %155 = arith.addf %154, %153 : vector<9x32xf32>
    %156 = arith.divf %154, %155 : vector<9x32xf32>
    %157 = vector.extract_strided_slice %149 {offsets = [9, 32], sizes = [9, 32], strides = [1, 1]} : vector<18x64xf32> to vector<9x32xf32>
    %158 = arith.addf %13, %157 : vector<9x32xf32>
    %159 = math.tanh %158 : vector<9x32xf32>
    %cst_37 = arith.constant 1.000000e+00 : f32
    %160 = vector.broadcast %cst_37 : f32 to vector<9x32xf32>
    %161 = arith.subf %160, %156 : vector<9x32xf32>
    %162 = arith.mulf %161, %145 : vector<9x32xf32>
    %163 = arith.mulf %156, %159 : vector<9x32xf32>
    %164 = arith.addf %162, %163 : vector<9x32xf32>
    %165 = vector.broadcast %3 : vector<9x1xf32> to vector<9x32xf32>
    %166 = arith.mulf %164, %165 : vector<9x32xf32>
    %cst_38 = arith.constant dense<0.000000e+00> : vector<6x32xf32>
    %167 = tpu.matmul %2, %166, %cst_38 {dimension_numbers = #tpu.dot_dimension_numbers<[1], [0], [0], [1], [0, 0, 1, 1], [], []>} : vector<6x9xf32>, vector<9x32xf32>, vector<6x32xf32> -> vector<6x32xf32>
    %c0_39 = arith.constant 0 : index
    %c0_40 = arith.constant 0 : index
    %168 = vector.load %arg8[%c0_39, %c0_40] : memref<6x32xf32, #tpu.memory_space<vmem>>, vector<6x32xf32>
    tpu.vector_store %arg8[%c0_39, %c0_40], %167 {strides = array<i32>} : memref<6x32xf32, #tpu.memory_space<vmem>>, vector<6x32xf32>,
    return
  }
}

</mosaic_0001>

<llo_original>
// kernel: tpu_custom_call.1
$region0: #{tpu_custom_call.1}
  #allocation0 [shape = 'u32[]', space=smem, size = 0x4, offset = 0x4, fixed_abs, tag = 'smem constant byte address 0x4 - core index']
  #allocation1 [shape = 'u32[144,128]{1,0:T(1,128)}', space=vmem, size = 0x12000, scoped, tag = 'internal scratch']
  %s0 = inlined_call_operand.hbm [shape: f32[9,32], index: 0, kind: input, shape index: {}]
  %s1 = inlined_call_operand.vmem [shape: f32[36,9], index: 1, kind: input, shape index: {}]
  %s2 = inlined_call_operand.vmem [shape: f32[6,9], index: 2, kind: input, shape index: {}]
  %s3 = inlined_call_operand.vmem [shape: f32[9,1], index: 3, kind: input, shape index: {}]
  %s4 = inlined_call_operand.vmem [shape: f32[32,96], index: 4, kind: input, shape index: {}]
  %s5 = inlined_call_operand.vmem [shape: f32[1,96], index: 5, kind: input, shape index: {}]
  %s6 = inlined_call_operand.vmem [shape: f32[32,32], index: 6, kind: input, shape index: {}]
  %s7 = inlined_call_operand.hbm [shape: f32[32,64], index: 7, kind: input, shape index: {}]
  %s8 = inlined_call_operand.hbm [shape: f32[6,32], index: 8, kind: output, shape index: {}]
  %s9 = sld [smem:[#allocation0]]
  $region50: #{tpu_custom_call.1} parent=0
    _
  %s11 = ssub.s32 1, %s9
  %s12 = scalar_select 0, %s11, %s9
  $region1: #{tpu_custom_call.1} parent=0
    #allocation2 [shape = 'u8[8192]{0}', space=vmem, size = 0x2000, scoped, tag = 'input window, operand 0, single buffered']
    #allocation3 [shape = 's32[1]{0}', space=sflag, size = 0x4, scoped, tag = 'scoped memory for tpu_custom_call.1']
    #allocation4 [shape = 's32[1]{0}', space=sflag, size = 0x4, scoped, tag = 'scoped memory for tpu_custom_call.1']
    #allocation5 [shape = 'u8[16384]{0}', space=vmem, size = 0x4000, scoped, tag = 'input window, operand 7, single buffered']
    #allocation6 [shape = 's32[1]{0}', space=sflag, size = 0x4, scoped, tag = 'scoped memory for tpu_custom_call.1']
    #allocation7 [shape = 'u8[4096]{0}', space=vmem, size = 0x1000, scoped, tag = 'output window, operand 0, single buffered']
    %13 = vsyncpa [#allocation3], 0
    %14 = vsyncpa [#allocation6], 0
    %15 = vsyncpa [#allocation4], 0
    // Predicated region
    $region2: #{tpu_custom_call.1} parent=1 // pred_check
      _
    $region3: #{tpu_custom_call.1} parent=1 // pred_check_branch
      %17 = sbr.rel (0) target = $region5
    $region4: #{tpu_custom_call.1} parent=1 // pred_region
      %s19 = ssub.s32 256, 256
      %20 = vsyncadd [#allocation3], %s19
      %s21 = sshll.u32 [#allocation2], 4
      %s22 = int_to_ptr.vmem [resolvable:$true] %s21
      %27 = dma.hbm_to_vmem [thread:$0]  %s0, 256, %s22, [#allocation3], 128, 128, 8
    $region5: #{tpu_custom_call.1} parent=1 // pred_fallthru
      _
    // Predicated region
    $region6: #{tpu_custom_call.1} parent=1 // pred_check
      _
    $region7: #{tpu_custom_call.1} parent=1 // pred_check_branch
      %29 = sbr.rel (0) target = $region9
    $region8: #{tpu_custom_call.1} parent=1 // pred_region
      _
    $region9: #{tpu_custom_call.1} parent=1 // pred_fallthru
      _
    // Predicated region
    $region10: #{tpu_custom_call.1} parent=1 // pred_check
      _
    $region11: #{tpu_custom_call.1} parent=1 // pred_check_branch
      %31 = sbr.rel (0) target = $region13
    $region12: #{tpu_custom_call.1} parent=1 // pred_region
      _
    $region13: #{tpu_custom_call.1} parent=1 // pred_fallthru
      _
    // Predicated region
    $region14: #{tpu_custom_call.1} parent=1 // pred_check
      _
    $region15: #{tpu_custom_call.1} parent=1 // pred_check_branch
      %33 = sbr.rel (0) target = $region17
    $region16: #{tpu_custom_call.1} parent=1 // pred_region
      _
    $region17: #{tpu_custom_call.1} parent=1 // pred_fallthru
      _
    // Predicated region
    $region18: #{tpu_custom_call.1} parent=1 // pred_check
      _
    $region19: #{tpu_custom_call.1} parent=1 // pred_check_branch
      %35 = sbr.rel (0) target = $region21
    $region20: #{tpu_custom_call.1} parent=1 // pred_region
      _
    $region21: #{tpu_custom_call.1} parent=1 // pred_fallthru
      _
    // Predicated region
    $region22: #{tpu_custom_call.1} parent=1 // pred_check
      _
    $region23: #{tpu_custom_call.1} parent=1 // pred_check_branch
      %37 = sbr.rel (0) target = $region25
    $region24: #{tpu_custom_call.1} parent=1 // pred_region
      _
    $region25: #{tpu_custom_call.1} parent=1 // pred_fallthru
      _
    // Predicated region
    $region26: #{tpu_custom_call.1} parent=1 // pred_check
      _
    $region27: #{tpu_custom_call.1} parent=1 // pred_check_branch
      %39 = sbr.rel (0) target = $region29
    $region28: #{tpu_custom_call.1} parent=1 // pred_region
      _
    $region29: #{tpu_custom_call.1} parent=1 // pred_fallthru
      _
    // Predicated region
    $region30: #{tpu_custom_call.1} parent=1 // pred_check
      _
    $region31: #{tpu_custom_call.1} parent=1 // pred_check_branch
      %41 = sbr.rel (0) target = $region33
    $region32: #{tpu_custom_call.1} parent=1 // pred_region
      %s43 = ssub.s32 512, 512
      %44 = vsyncadd [#allocation6], %s43
      %s45 = sshll.u32 [#allocation5], 4
      %s46 = int_to_ptr.vmem [resolvable:$true] %s45
      %51 = dma.hbm_to_vmem [thread:$0]  %s7, 512, %s46, [#allocation6], 128, 128, 8
    $region33: #{tpu_custom_call.1} parent=1 // pred_fallthru
      _
    // Predicated region
    $region34: #{tpu_custom_call.1} parent=1 // pred_check
      _
    $region35: #{tpu_custom_call.1} parent=1 // pred_check_branch
      %53 = sbr.rel (0) target = $region37
    $region36: #{tpu_custom_call.1} parent=1 // pred_region
      %54 = dma.done [#allocation3], 256
    $region37: #{tpu_custom_call.1} parent=1 // pred_fallthru
      _
    // Predicated region
    $region38: #{tpu_custom_call.1} parent=1 // pred_check
      _
    $region39: #{tpu_custom_call.1} parent=1 // pred_check_branch
      %56 = sbr.rel (0) target = $region41
    $region40: #{tpu_custom_call.1} parent=1 // pred_region
      %57 = dma.done [#allocation6], 512
    $region41: #{tpu_custom_call.1} parent=1 // pred_fallthru
      _
    %v58 = vld [vmem:[#allocation2] sm:$0xff]
    %v59 = vld [vmem:[#allocation2 + $0x8] sm:$0x1]
    %v60 = vld [vmem:[%s1] sm:$0xff]
    %v61 = vld [vmem:[%s1 + $0x8] sm:$0xff]
    %v62 = vld [vmem:[%s1 + $0x10] sm:$0xff]
    %v63 = vld [vmem:[%s1 + $0x18] sm:$0xff]
    %v64 = vld [vmem:[%s1 + $0x20] sm:$0xf]
    %v65 = vld [vmem:[%s2] sm:$0x3f]
    %v66 = vld [vmem:[%s3] sm:$0xff]
    %v67 = vld [vmem:[%s3 + $0x8] sm:$0x1]
    %v68 = vld [vmem:[%s4] sm:$0xff]
    %v69 = vld [vmem:[%s4 + $0x8] sm:$0xff]
    %v70 = vld [vmem:[%s4 + $0x10] sm:$0xff]
    %v71 = vld [vmem:[%s4 + $0x18] sm:$0xff]
    %v72 = vld [vmem:[%s5] sm:$0x1]
    %v73 = vld [vmem:[%s6] sm:$0xff]
    %v74 = vld [vmem:[%s6 + $0x8] sm:$0xff]
    %v75 = vld [vmem:[%s6 + $0x10] sm:$0xff]
    %v76 = vld [vmem:[%s6 + $0x18] sm:$0xff]
    %v77 = vld [vmem:[#allocation5] sm:$0xff]
    %v78 = vld [vmem:[#allocation5 + $0x8] sm:$0xff]
    %v79 = vld [vmem:[#allocation5 + $0x10] sm:$0xff]
    %v80 = vld [vmem:[#allocation5 + $0x18] sm:$0xff]
    %v82 = vlaneseq
    %v83 = vshrl.u32 %v82, 7
    %v84 = vsub.s32 0, %v83
    %v85 = vrot.slane %v72, %v84
    %vm87 = vcmask 261120
    %v89 = vsel %vm87, %v58, 0
    %v92 = vsel %vm87, %v59, 0
    %94 = vmatprep.subr.mxu0 0.0
    %95 = vmatpush1.msra.mxu0 0.0
    %96 = vmatprep.subr.mxu0 0.0
    %97 = vmatpush1.msra.mxu0 0.0
    %98 = vmatprep.subr.mxu0 0.0
    %99 = vmatpush1.msra.mxu0 0.0
    %100 = vmatprep.subr.mxu0 0.0
    %101 = vmatpush1.msra.mxu0 0.0
    %102 = vmatprep.subr.mxu0 0.0
    %103 = vmatpush1.msra.mxu0 0.0
    %104 = vmatprep.subr.mxu0 0.0
    %105 = vmatpush1.msra.mxu0 0.0
    %106 = vmatprep.subr.mxu0 0.0
    %107 = vmatpush1.msra.mxu0 0.0
    %108 = vmatprep.subr.mxu0 0.0
    %109 = vmatpush1.msra.mxu0 0.0
    %110 = vmatprep.subr.mxu0 0.0
    %111 = vmatpush1.msra.mxu0 0.0
    %112 = vmatprep.subr.mxu0 0.0
    %113 = vmatpush1.msra.mxu0 0.0
    %114 = vmatprep.subr.mxu0 0.0
    %115 = vmatpush1.msra.mxu0 0.0
    %116 = vmatprep.subr.mxu0 0.0
    %117 = vmatpush1.msra.mxu0 0.0
    %118 = vmatprep.subr.mxu0 0.0
    %119 = vmatpush1.msra.mxu0 %v71
    %120 = vmatprep.subr.mxu0 0.0
    %121 = vmatpush1.msra.mxu0 %v70
    %122 = vmatprep.subr.mxu0 0.0
    %123 = vmatpush1.msra.mxu0 %v69
    %124 = vmatprep.subr.mxu0 0.0
    %125 = vmatpush1.msra.mxu0 %v68
    %126 = vmatprep.subr.mxu0 0.0
    %127 = vmatpush2.msra.mxu0 0.0
    %128 = vmatprep.subr.mxu0 0.0
    %129 = vmatpush2.msra.mxu0 0.0
    %130 = vmatprep.subr.mxu0 0.0
    %131 = vmatpush2.msra.mxu0 0.0
    %132 = vmatprep.subr.mxu0 0.0
    %133 = vmatpush2.msra.mxu0 0.0
    %134 = vmatprep.subr.mxu0 0.0
    %135 = vmatpush2.msra.mxu0 0.0
    %136 = vmatprep.subr.mxu0 0.0
    %137 = vmatpush2.msra.mxu0 0.0
    %138 = vmatprep.subr.mxu0 0.0
    %139 = vmatpush2.msra.mxu0 0.0
    %140 = vmatprep.subr.mxu0 0.0
    %141 = vmatpush2.msra.mxu0 0.0
    %142 = vmatprep.subr.mxu0 0.0
    %143 = vmatpush2.msra.mxu0 0.0
    %144 = vmatprep.subr.mxu0 0.0
    %145 = vmatpush2.msra.mxu0 0.0
    %146 = vmatprep.subr.mxu0 0.0
    %147 = vmatpush2.msra.mxu0 0.0
    %148 = vmatprep.subr.mxu0 0.0
    %149 = vmatpush2.msra.mxu0 0.0
    %150 = vmatprep.subr.mxu0 0.0
    %151 = vmatpush2.msra.mxu0 0.0
    %152 = vmatprep.subr.mxu0 0.0
    %153 = vmatpush2.msra.mxu0 0.0
    %154 = vmatprep.subr.mxu0 0.0
    %155 = vmatpush2.msra.mxu0 0.0
    %156 = vmatprep.subr.mxu0 0.0
    %157 = vmatpush2.msra.mxu0 0.0
    %158 = vmatprep.mubr.f32.mxu0 0.0
    %159 = vmatmul.mubr.f32.gmra.mxu0 %v89
    %v160 = vpop.f32.mrf.mxu0
    %v161 = vadd.f32 %v85, %v160
    %v162 = vpop.f32.mrf.mxu0
    %163 = vmatprep.mubr.f32.mxu0 0.0
    %164 = vmatmul.mubr.f32.gmra.mxu0 %v92
    %v165 = vpop.f32.mrf.mxu0
    %v166 = vadd.f32 %v85, %v165
    %v167 = vpop.f32.mrf.mxu0
    %168 = vdwg.mxu0
    %v169 = vxor.u32 %v161, 2147483648
    %v170 = vxor.u32 %v166, 2147483648
    %v171 = vmul.f32 %v169, 1.442695
    %v172 = vpow.pop %v171
    %v173 = vmul.f32 %v170, 1.442695
    %v174 = vpow.pop %v173
    %v175 = vadd.f32 %v172, 1.0
    %v176 = vadd.f32 %v174, 1.0
    %v177 = vrcp.pop %v175
    %v178 = vmul.f32 1.0, %v177
    %v179 = vrcp.pop %v176
    %v180 = vmul.f32 1.0, %v179
    %v181 = vtanh.pop %v161
    %v182 = vtanh.pop %v166
    %185 = vrot.lane.b32.xlu0 %v181, 96
    %v186 = vpop.permute.xlu0 %185
    %187 = vrot.lane.b32.xlu0 %v182, 96
    %v188 = vpop.permute.xlu0 %187
    %v191 = vmul.f32 %v178, %v186
    %v192 = vmul.f32 %v180, %v188
    %194 = vset.pattern.permute.xlu0 0
    %195 = vperm.xlu0 %194, %v66
    %v196 = vpop.permute.xlu0 %195
    %199 = vset.pattern.permute.xlu0 0
    %200 = vperm.xlu0 %199, %v67
    %v201 = vpop.permute.xlu0 %200
    %v203 = vmul.f32 %v191, %v196
    %v204 = vmul.f32 %v192, %v201
    %207 = vrot.lane.b32.xlu0 %v203, 96
    %v208 = vpop.permute.xlu0 %207
    %209 = vrot.lane.b32.xlu0 %v204, 96
    %v210 = vpop.permute.xlu0 %209
    %v211 = vsel %vm87, %v208, 0
    %v213 = vsel %vm87, %v210, 0
    %215 = vmatprep.subr.mxu0 0.0
    %216 = vmatpush1.msra.mxu0 0.0
    %217 = vmatprep.subr.mxu0 0.0
    %218 = vmatpush1.msra.mxu0 0.0
    %219 = vmatprep.subr.mxu0 0.0
    %220 = vmatpush1.msra.mxu0 0.0
    %221 = vmatprep.subr.mxu0 0.0
    %222 = vmatpush1.msra.mxu0 0.0
    %223 = vmatprep.subr.mxu0 0.0
    %224 = vmatpush1.msra.mxu0 0.0
    %225 = vmatprep.subr.mxu0 0.0
    %226 = vmatpush1.msra.mxu0 0.0
    %227 = vmatprep.subr.mxu0 0.0
    %228 = vmatpush1.msra.mxu0 0.0
    %229 = vmatprep.subr.mxu0 0.0
    %230 = vmatpush1.msra.mxu0 0.0
    %231 = vmatprep.subr.mxu0 0.0
    %232 = vmatpush1.msra.mxu0 0.0
    %233 = vmatprep.subr.mxu0 0.0
    %234 = vmatpush1.msra.mxu0 0.0
    %235 = vmatprep.subr.mxu0 0.0
    %236 = vmatpush1.msra.mxu0 0.0
    %237 = vmatprep.subr.mxu0 0.0
    %238 = vmatpush1.msra.mxu0 0.0
    %239 = vmatprep.subr.mxu0 0.0
    %240 = vmatpush1.msra.mxu0 %v76
    %241 = vmatprep.subr.mxu0 0.0
    %242 = vmatpush1.msra.mxu0 %v75
    %243 = vmatprep.subr.mxu0 0.0
    %244 = vmatpush1.msra.mxu0 %v74
    %245 = vmatprep.subr.mxu0 0.0
    %246 = vmatpush1.msra.mxu0 %v73
    %247 = vmatprep.subr.mxu0 0.0
    %248 = vmatpush2.msra.mxu0 0.0
    %249 = vmatprep.subr.mxu0 0.0
    %250 = vmatpush2.msra.mxu0 0.0
    %251 = vmatprep.subr.mxu0 0.0
    %252 = vmatpush2.msra.mxu0 0.0
    %253 = vmatprep.subr.mxu0 0.0
    %254 = vmatpush2.msra.mxu0 0.0
    %255 = vmatprep.subr.mxu0 0.0
    %256 = vmatpush2.msra.mxu0 0.0
    %257 = vmatprep.subr.mxu0 0.0
    %258 = vmatpush2.msra.mxu0 0.0
    %259 = vmatprep.subr.mxu0 0.0
    %260 = vmatpush2.msra.mxu0 0.0
    %261 = vmatprep.subr.mxu0 0.0
    %262 = vmatpush2.msra.mxu0 0.0
    %263 = vmatprep.subr.mxu0 0.0
    %264 = vmatpush2.msra.mxu0 0.0
    %265 = vmatprep.subr.mxu0 0.0
    %266 = vmatpush2.msra.mxu0 0.0
    %267 = vmatprep.subr.mxu0 0.0
    %268 = vmatpush2.msra.mxu0 0.0
    %269 = vmatprep.subr.mxu0 0.0
    %270 = vmatpush2.msra.mxu0 0.0
    %271 = vmatprep.subr.mxu0 0.0
    %272 = vmatpush2.msra.mxu0 0.0
    %273 = vmatprep.subr.mxu0 0.0
    %274 = vmatpush2.msra.mxu0 0.0
    %275 = vmatprep.subr.mxu0 0.0
    %276 = vmatpush2.msra.mxu0 0.0
    %277 = vmatprep.subr.mxu0 0.0
    %278 = vmatpush2.msra.mxu0 0.0
    %279 = vmatprep.mubr.f32.mxu0 0.0
    %280 = vmatmul.mubr.f32.gmra.mxu0 %v211
    %v281 = vpop.f32.mrf.mxu0
    %v282 = vadd.f32 0.0, %v281
    %v283 = vpop.f32.mrf.mxu0
    %284 = vmatprep.mubr.f32.mxu0 0.0
    %285 = vmatmul.mubr.f32.gmra.mxu0 %v213
    %v286 = vpop.f32.mrf.mxu0
    %v287 = vadd.f32 0.0, %v286
    %v288 = vpop.f32.mrf.mxu0
    %289 = vdwg.mxu0
    %294 = vrot.lane.b32.xlu0 %v282, 32
    %v295 = vpop.permute.xlu0 %294
    %296 = vrot.lane.b32.xlu0 %v287, 32
    %v297 = vpop.permute.xlu0 %296
    %v300 = vsel %vm87, %v208, %v295
    %v301 = vsel %vm87, %v210, %v297
    %vm302 = vcmask 72704
    %v304 = vsel %vm302, %v60, 0
    %v307 = vsel %vm302, %v61, 0
    %v310 = vsel %vm302, %v62, 0
    %v313 = vsel %vm302, %v63, 0
    %v316 = vsel %vm302, %v64, 0
    %vm318 = vcmask 1040384
    %v320 = vsel %vm318, %v301, 0
    %322 = vmatprep.subr.mxu0 0.0
    %323 = vmatpush1.msra.mxu0 0.0
    %324 = vmatprep.subr.mxu0 0.0
    %325 = vmatpush1.msra.mxu0 0.0
    %326 = vmatprep.subr.mxu0 0.0
    %327 = vmatpush1.msra.mxu0 0.0
    %328 = vmatprep.subr.mxu0 0.0
    %329 = vmatpush1.msra.mxu0 0.0
    %330 = vmatprep.subr.mxu0 0.0
    %331 = vmatpush1.msra.mxu0 0.0
    %332 = vmatprep.subr.mxu0 0.0
    %333 = vmatpush1.msra.mxu0 0.0
    %334 = vmatprep.subr.mxu0 0.0
    %335 = vmatpush1.msra.mxu0 0.0
    %336 = vmatprep.subr.mxu0 0.0
    %337 = vmatpush1.msra.mxu0 0.0
    %338 = vmatprep.subr.mxu0 0.0
    %339 = vmatpush1.msra.mxu0 0.0
    %340 = vmatprep.subr.mxu0 0.0
    %341 = vmatpush1.msra.mxu0 0.0
    %342 = vmatprep.subr.mxu0 0.0
    %343 = vmatpush1.msra.mxu0 0.0
    %344 = vmatprep.subr.mxu0 0.0
    %345 = vmatpush1.msra.mxu0 0.0
    %346 = vmatprep.subr.mxu0 0.0
    %347 = vmatpush1.msra.mxu0 0.0
    %348 = vmatprep.subr.mxu0 0.0
    %349 = vmatpush1.msra.mxu0 0.0
    %350 = vmatprep.subr.mxu0 0.0
    %351 = vmatpush1.msra.mxu0 %v320
    %352 = vmatprep.subr.mxu0 0.0
    %353 = vmatpush1.msra.mxu0 %v300
    %354 = vmatprep.subr.mxu0 0.0
    %355 = vmatpush2.msra.mxu0 0.0
    %356 = vmatprep.subr.mxu0 0.0
    %357 = vmatpush2.msra.mxu0 0.0
    %358 = vmatprep.subr.mxu0 0.0
    %359 = vmatpush2.msra.mxu0 0.0
    %360 = vmatprep.subr.mxu0 0.0
    %361 = vmatpush2.msra.mxu0 0.0
    %362 = vmatprep.subr.mxu0 0.0
    %363 = vmatpush2.msra.mxu0 0.0
    %364 = vmatprep.subr.mxu0 0.0
    %365 = vmatpush2.msra.mxu0 0.0
    %366 = vmatprep.subr.mxu0 0.0
    %367 = vmatpush2.msra.mxu0 0.0
    %368 = vmatprep.subr.mxu0 0.0
    %369 = vmatpush2.msra.mxu0 0.0
    %370 = vmatprep.subr.mxu0 0.0
    %371 = vmatpush2.msra.mxu0 0.0
    %372 = vmatprep.subr.mxu0 0.0
    %373 = vmatpush2.msra.mxu0 0.0
    %374 = vmatprep.subr.mxu0 0.0
    %375 = vmatpush2.msra.mxu0 0.0
    %376 = vmatprep.subr.mxu0 0.0
    %377 = vmatpush2.msra.mxu0 0.0
    %378 = vmatprep.subr.mxu0 0.0
    %379 = vmatpush2.msra.mxu0 0.0
    %380 = vmatprep.subr.mxu0 0.0
    %381 = vmatpush2.msra.mxu0 0.0
    %382 = vmatprep.subr.mxu0 0.0
    %383 = vmatpush2.msra.mxu0 0.0
    %384 = vmatprep.subr.mxu0 0.0
    %385 = vmatpush2.msra.mxu0 0.0
    %386 = vmatprep.mubr.f32.mxu0 0.0
    %387 = vmatmul.mubr.f32.gmra.mxu0 %v304
    %v388 = vpop.f32.mrf.mxu0
    %v389 = vadd.f32 0.0, %v388
    %v390 = vpop.f32.mrf.mxu0
    %391 = vmatprep.mubr.f32.mxu0 0.0
    %392 = vmatmul.mubr.f32.gmra.mxu0 %v307
    %v393 = vpop.f32.mrf.mxu0
    %v394 = vadd.f32 0.0, %v393
    %v395 = vpop.f32.mrf.mxu0
    %396 = vmatprep.mubr.f32.mxu0 0.0
    %397 = vmatmul.mubr.f32.gmra.mxu0 %v310
    %v398 = vpop.f32.mrf.mxu0
    %v399 = vadd.f32 0.0, %v398
    %v400 = vpop.f32.mrf.mxu0
    %401 = vmatprep.mubr.f32.mxu0 0.0
    %402 = vmatmul.mubr.f32.gmra.mxu0 %v313
    %v403 = vpop.f32.mrf.mxu0
    %v404 = vadd.f32 0.0, %v403
    %v405 = vpop.f32.mrf.mxu0
    %406 = vmatprep.mubr.f32.mxu0 0.0
    %407 = vmatmul.mubr.f32.gmra.mxu0 %v316
    %v408 = vpop.f32.mrf.mxu0
    %v409 = vadd.f32 0.0, %v408
    %v410 = vpop.f32.mrf.mxu0
    %411 = vdwg.mxu0
    %414 = vrot.lane.b32.xlu0 %v389, 96
    %v415 = vpop.permute.xlu0 %414
    %416 = vrot.lane.b32.xlu0 %v394, 96
    %v417 = vpop.permute.xlu0 %416
    %v420 = vadd.f32 %v161, %v415
    %v421 = vadd.f32 %v166, %v417
    %v422 = vxor.u32 %v420, 2147483648
    %v423 = vxor.u32 %v421, 2147483648
    %v424 = vmul.f32 %v422, 1.442695
    %v425 = vpow.pop %v424
    %v426 = vmul.f32 %v423, 1.442695
    %v427 = vpow.pop %v426
    %v428 = vadd.f32 %v425, 1.0
    %v429 = vadd.f32 %v427, 1.0
    %v430 = vrcp.pop %v428
    %v431 = vmul.f32 1.0, %v430
    %v432 = vrcp.pop %v429
    %v433 = vmul.f32 1.0, %v432
    %v434 = vadd.f32 %v389, 0.0
    %v435 = vadd.f32 %v394, 0.0
    %v436 = vmul.f32 %v431, %v389
    %v437 = vmul.f32 %v433, %v394
    %v438 = vadd.f32 %v436, 0.0
    %v439 = vadd.f32 %v437, 0.0
    %vm441 = vcmask 1046528
    %v442 = vrot.slane %v394, 1
    %v443 = vrot.slane %v399, 1
    %v444 = vsel %vm441, %v442, %v443
    %445 = vrot.lane.b32.xlu0 %v444, 96
    %v446 = vpop.permute.xlu0 %445
    %447 = vrot.lane.b32.xlu0 %v443, 96
    %v448 = vpop.permute.xlu0 %447
    %v451 = vadd.f32 %v161, %v446
    %v452 = vadd.f32 %v166, %v448
    %v453 = vxor.u32 %v451, 2147483648
    %v454 = vxor.u32 %v452, 2147483648
    %v455 = vmul.f32 %v453, 1.442695
    %v456 = vpow.pop %v455
    %v457 = vmul.f32 %v454, 1.442695
    %v458 = vpow.pop %v457
    %v459 = vadd.f32 %v456, 1.0
    %v460 = vadd.f32 %v458, 1.0
    %v461 = vrcp.pop %v459
    %v462 = vmul.f32 1.0, %v461
    %v463 = vrcp.pop %v460
    %v464 = vmul.f32 1.0, %v463
    %v467 = vadd.f32 %v434, %v444
    %v468 = vadd.f32 %v435, %v443
    %v469 = vmul.f32 %v462, %v444
    %v470 = vmul.f32 %v464, %v443
    %v471 = vadd.f32 %v438, %v469
    %v472 = vadd.f32 %v439, %v470
    %vm474 = vcmask 1045504
    %v475 = vrot.slane %v399, 2
    %v476 = vrot.slane %v404, 2
    %v477 = vsel %vm474, %v475, %v476
    %478 = vrot.lane.b32.xlu0 %v477, 96
    %v479 = vpop.permute.xlu0 %478
    %480 = vrot.lane.b32.xlu0 %v476, 96
    %v481 = vpop.permute.xlu0 %480
    %v484 = vadd.f32 %v161, %v479
    %v485 = vadd.f32 %v166, %v481
    %v486 = vxor.u32 %v484, 2147483648
    %v487 = vxor.u32 %v485, 2147483648
    %v488 = vmul.f32 %v486, 1.442695
    %v489 = vpow.pop %v488
    %v490 = vmul.f32 %v487, 1.442695
    %v491 = vpow.pop %v490
    %v492 = vadd.f32 %v489, 1.0
    %v493 = vadd.f32 %v491, 1.0
    %v494 = vrcp.pop %v492
    %v495 = vmul.f32 1.0, %v494
    %v496 = vrcp.pop %v493
    %v497 = vmul.f32 1.0, %v496
    %v500 = vadd.f32 %v467, %v477
    %v501 = vadd.f32 %v468, %v476
    %v502 = vmul.f32 %v495, %v477
    %v503 = vmul.f32 %v497, %v476
    %v504 = vadd.f32 %v471, %v502
    %v505 = vadd.f32 %v472, %v503
    %vm507 = vcmask 1044480
    %v508 = vrot.slane %v404, 3
    %v509 = vrot.slane %v409, 3
    %v510 = vsel %vm507, %v508, %v509
    %511 = vrot.lane.b32.xlu0 %v510, 96
    %v512 = vpop.permute.xlu0 %511
    %513 = vrot.lane.b32.xlu0 %v509, 96
    %v514 = vpop.permute.xlu0 %513
    %v517 = vadd.f32 %v161, %v512
    %v518 = vadd.f32 %v166, %v514
    %v519 = vxor.u32 %v517, 2147483648
    %v520 = vxor.u32 %v518, 2147483648
    %v521 = vmul.f32 %v519, 1.442695
    %v522 = vpow.pop %v521
    %v523 = vmul.f32 %v520, 1.442695
    %v524 = vpow.pop %v523
    %v525 = vadd.f32 %v522, 1.0
    %v526 = vadd.f32 %v524, 1.0
    %v527 = vrcp.pop %v525
    %v528 = vmul.f32 1.0, %v527
    %v529 = vrcp.pop %v526
    %v530 = vmul.f32 1.0, %v529
    %v533 = vadd.f32 %v500, %v510
    %v534 = vadd.f32 %v501, %v509
    %v535 = vmul.f32 %v528, %v510
    %v536 = vmul.f32 %v530, %v509
    %v537 = vadd.f32 %v504, %v535
    %v538 = vadd.f32 %v505, %v536
    %v541 = vrot.slane %v537, 7
    %v542 = vrot.slane %v538, 7
    %v543 = vsel %vm318, %v541, %v542
    %v545 = vsel %vm318, %v534, %v541
    %v547 = vsel %vm87, %v533, 0
    %v550 = vsel %vm87, %v545, 0
    %v552 = vsel %vm87, %v543, 0
    %554 = vmatprep.subr.mxu0 0.0
    %555 = vmatpush1.msra.mxu0 0.0
    %556 = vmatprep.subr.mxu0 0.0
    %557 = vmatpush1.msra.mxu0 0.0
    %558 = vmatprep.subr.mxu0 0.0
    %559 = vmatpush1.msra.mxu0 0.0
    %560 = vmatprep.subr.mxu0 0.0
    %561 = vmatpush1.msra.mxu0 0.0
    %562 = vmatprep.subr.mxu0 0.0
    %563 = vmatpush1.msra.mxu0 0.0
    %564 = vmatprep.subr.mxu0 0.0
    %565 = vmatpush1.msra.mxu0 0.0
    %566 = vmatprep.subr.mxu0 0.0
    %567 = vmatpush1.msra.mxu0 0.0
    %568 = vmatprep.subr.mxu0 0.0
    %569 = vmatpush1.msra.mxu0 0.0
    %570 = vmatprep.subr.mxu0 0.0
    %571 = vmatpush1.msra.mxu0 0.0
    %572 = vmatprep.subr.mxu0 0.0
    %573 = vmatpush1.msra.mxu0 0.0
    %574 = vmatprep.subr.mxu0 0.0
    %575 = vmatpush1.msra.mxu0 0.0
    %576 = vmatprep.subr.mxu0 0.0
    %577 = vmatpush1.msra.mxu0 0.0
    %578 = vmatprep.subr.mxu0 0.0
    %579 = vmatpush1.msra.mxu0 %v80
    %580 = vmatprep.subr.mxu0 0.0
    %581 = vmatpush1.msra.mxu0 %v79
    %582 = vmatprep.subr.mxu0 0.0
    %583 = vmatpush1.msra.mxu0 %v78
    %584 = vmatprep.subr.mxu0 0.0
    %585 = vmatpush1.msra.mxu0 %v77
    %586 = vmatprep.subr.mxu0 0.0
    %587 = vmatpush2.msra.mxu0 0.0
    %588 = vmatprep.subr.mxu0 0.0
    %589 = vmatpush2.msra.mxu0 0.0
    %590 = vmatprep.subr.mxu0 0.0
    %591 = vmatpush2.msra.mxu0 0.0
    %592 = vmatprep.subr.mxu0 0.0
    %593 = vmatpush2.msra.mxu0 0.0
    %594 = vmatprep.subr.mxu0 0.0
    %595 = vmatpush2.msra.mxu0 0.0
    %596 = vmatprep.subr.mxu0 0.0
    %597 = vmatpush2.msra.mxu0 0.0
    %598 = vmatprep.subr.mxu0 0.0
    %599 = vmatpush2.msra.mxu0 0.0
    %600 = vmatprep.subr.mxu0 0.0
    %601 = vmatpush2.msra.mxu0 0.0
    %602 = vmatprep.subr.mxu0 0.0
    %603 = vmatpush2.msra.mxu0 0.0
    %604 = vmatprep.subr.mxu0 0.0
    %605 = vmatpush2.msra.mxu0 0.0
    %606 = vmatprep.subr.mxu0 0.0
    %607 = vmatpush2.msra.mxu0 0.0
    %608 = vmatprep.subr.mxu0 0.0
    %609 = vmatpush2.msra.mxu0 0.0
    %610 = vmatprep.subr.mxu0 0.0
    %611 = vmatpush2.msra.mxu0 0.0
    %612 = vmatprep.subr.mxu0 0.0
    %613 = vmatpush2.msra.mxu0 0.0
    %614 = vmatprep.subr.mxu0 0.0
    %615 = vmatpush2.msra.mxu0 0.0
    %616 = vmatprep.subr.mxu0 0.0
    %617 = vmatpush2.msra.mxu0 0.0
    %618 = vmatprep.mubr.f32.mxu0 0.0
    %619 = vmatmul.mubr.f32.gmra.mxu0 %v547
    %v620 = vpop.f32.mrf.mxu0
    %v621 = vadd.f32 0.0, %v620
    %v622 = vpop.f32.mrf.mxu0
    %623 = vmatprep.mubr.f32.mxu0 0.0
    %624 = vmatmul.mubr.f32.gmra.mxu0 %v550
    %v625 = vpop.f32.mrf.mxu0
    %v626 = vadd.f32 0.0, %v625
    %v627 = vpop.f32.mrf.mxu0
    %628 = vmatprep.mubr.f32.mxu0 0.0
    %629 = vmatmul.mubr.f32.gmra.mxu0 %v552
    %v630 = vpop.f32.mrf.mxu0
    %v631 = vadd.f32 0.0, %v630
    %v632 = vpop.f32.mrf.mxu0
    %633 = vdwg.mxu0
    %636 = vrot.lane.b32.xlu0 %v621, 32
    %v637 = vpop.permute.xlu0 %636
    %638 = vrot.lane.b32.xlu0 %v626, 32
    %v639 = vpop.permute.xlu0 %638
    %v642 = vadd.f32 %v161, %v637
    %v643 = vadd.f32 %v166, %v639
    %v644 = vxor.u32 %v642, 2147483648
    %v645 = vxor.u32 %v643, 2147483648
    %v646 = vmul.f32 %v644, 1.442695
    %v647 = vpow.pop %v646
    %v648 = vmul.f32 %v645, 1.442695
    %v649 = vpow.pop %v648
    %v650 = vadd.f32 %v647, 1.0
    %v651 = vadd.f32 %v649, 1.0
    %v652 = vrcp.pop %v650
    %v653 = vmul.f32 1.0, %v652
    %v654 = vrcp.pop %v651
    %v655 = vmul.f32 1.0, %v654
    %v657 = vrot.slane %v626, 1
    %v658 = vrot.slane %v631, 1
    %v659 = vsel %vm441, %v657, %v658
    %660 = vrot.lane.b32.xlu0 %v659, 32
    %v661 = vpop.permute.xlu0 %660
    %662 = vrot.lane.b32.xlu0 %v658, 32
    %v663 = vpop.permute.xlu0 %662
    %v666 = vadd.f32 %v161, %v661
    %v667 = vadd.f32 %v166, %v663
    %v668 = vtanh.pop %v666
    %v669 = vtanh.pop %v667
    %v670 = vsub.f32 1.0, %v653
    %v671 = vsub.f32 1.0, %v655
    %673 = vrot.lane.b32.xlu0 %v533, 32
    %v674 = vpop.permute.xlu0 %673
    %675 = vrot.lane.b32.xlu0 %v534, 32
    %v676 = vpop.permute.xlu0 %675
    %v679 = vmul.f32 %v670, %v674
    %v680 = vmul.f32 %v671, %v676
    %683 = vrot.lane.b32.xlu0 %v668, 96
    %v684 = vpop.permute.xlu0 %683
    %685 = vrot.lane.b32.xlu0 %v669, 96
    %v686 = vpop.permute.xlu0 %685
    %v689 = vmul.f32 %v653, %v684
    %v690 = vmul.f32 %v655, %v686
    %v691 = vadd.f32 %v679, %v689
    %v692 = vadd.f32 %v680, %v690
    %v693 = vmul.f32 %v691, %v196
    %v694 = vmul.f32 %v692, %v201
    %697 = vrot.lane.b32.xlu0 %v693, 96
    %v698 = vpop.permute.xlu0 %697
    %699 = vrot.lane.b32.xlu0 %v694, 96
    %v700 = vpop.permute.xlu0 %699
    %v701 = vsel %vm87, %v698, 0
    %v703 = vsel %vm87, %v700, 0
    %705 = vmatprep.subr.mxu0 0.0
    %706 = vmatpush1.msra.mxu0 0.0
    %707 = vmatprep.subr.mxu0 0.0
    %708 = vmatpush1.msra.mxu0 0.0
    %709 = vmatprep.subr.mxu0 0.0
    %710 = vmatpush1.msra.mxu0 0.0
    %711 = vmatprep.subr.mxu0 0.0
    %712 = vmatpush1.msra.mxu0 0.0
    %713 = vmatprep.subr.mxu0 0.0
    %714 = vmatpush1.msra.mxu0 0.0
    %715 = vmatprep.subr.mxu0 0.0
    %716 = vmatpush1.msra.mxu0 0.0
    %717 = vmatprep.subr.mxu0 0.0
    %718 = vmatpush1.msra.mxu0 0.0
    %719 = vmatprep.subr.mxu0 0.0
    %720 = vmatpush1.msra.mxu0 0.0
    %721 = vmatprep.subr.mxu0 0.0
    %722 = vmatpush1.msra.mxu0 0.0
    %723 = vmatprep.subr.mxu0 0.0
    %724 = vmatpush1.msra.mxu0 0.0
    %725 = vmatprep.subr.mxu0 0.0
    %726 = vmatpush1.msra.mxu0 0.0
    %727 = vmatprep.subr.mxu0 0.0
    %728 = vmatpush1.msra.mxu0 0.0
    %729 = vmatprep.subr.mxu0 0.0
    %730 = vmatpush1.msra.mxu0 %v76
    %731 = vmatprep.subr.mxu0 0.0
    %732 = vmatpush1.msra.mxu0 %v75
    %733 = vmatprep.subr.mxu0 0.0
    %734 = vmatpush1.msra.mxu0 %v74
    %735 = vmatprep.subr.mxu0 0.0
    %736 = vmatpush1.msra.mxu0 %v73
    %737 = vmatprep.subr.mxu0 0.0
    %738 = vmatpush2.msra.mxu0 0.0
    %739 = vmatprep.subr.mxu0 0.0
    %740 = vmatpush2.msra.mxu0 0.0
    %741 = vmatprep.subr.mxu0 0.0
    %742 = vmatpush2.msra.mxu0 0.0
    %743 = vmatprep.subr.mxu0 0.0
    %744 = vmatpush2.msra.mxu0 0.0
    %745 = vmatprep.subr.mxu0 0.0
    %746 = vmatpush2.msra.mxu0 0.0
    %747 = vmatprep.subr.mxu0 0.0
    %748 = vmatpush2.msra.mxu0 0.0
    %749 = vmatprep.subr.mxu0 0.0
    %750 = vmatpush2.msra.mxu0 0.0
    %751 = vmatprep.subr.mxu0 0.0
    %752 = vmatpush2.msra.mxu0 0.0
    %753 = vmatprep.subr.mxu0 0.0
    %754 = vmatpush2.msra.mxu0 0.0
    %755 = vmatprep.subr.mxu0 0.0
    %756 = vmatpush2.msra.mxu0 0.0
    %757 = vmatprep.subr.mxu0 0.0
    %758 = vmatpush2.msra.mxu0 0.0
    %759 = vmatprep.subr.mxu0 0.0
    %760 = vmatpush2.msra.mxu0 0.0
    %761 = vmatprep.subr.mxu0 0.0
    %762 = vmatpush2.msra.mxu0 0.0
    %763 = vmatprep.subr.mxu0 0.0
    %764 = vmatpush2.msra.mxu0 0.0
    %765 = vmatprep.subr.mxu0 0.0
    %766 = vmatpush2.msra.mxu0 0.0
    %767 = vmatprep.subr.mxu0 0.0
    %768 = vmatpush2.msra.mxu0 0.0
    %769 = vmatprep.mubr.f32.mxu0 0.0
    %770 = vmatmul.mubr.f32.gmra.mxu0 %v701
    %v771 = vpop.f32.mrf.mxu0
    %v772 = vadd.f32 0.0, %v771
    %v773 = vpop.f32.mrf.mxu0
    %774 = vmatprep.mubr.f32.mxu0 0.0
    %775 = vmatmul.mubr.f32.gmra.mxu0 %v703
    %v776 = vpop.f32.mrf.mxu0
    %v777 = vadd.f32 0.0, %v776
    %v778 = vpop.f32.mrf.mxu0
    %779 = vdwg.mxu0
    %784 = vrot.lane.b32.xlu0 %v772, 32
    %v785 = vpop.permute.xlu0 %784
    %786 = vrot.lane.b32.xlu0 %v777, 32
    %v787 = vpop.permute.xlu0 %786
    %v790 = vsel %vm87, %v698, %v785
    %v791 = vsel %vm87, %v700, %v787
    %v793 = vsel %vm318, %v791, 0
    %795 = vmatprep.subr.mxu0 0.0
    %796 = vmatpush1.msra.mxu0 0.0
    %797 = vmatprep.subr.mxu0 0.0
    %798 = vmatpush1.msra.mxu0 0.0
    %799 = vmatprep.subr.mxu0 0.0
    %800 = vmatpush1.msra.mxu0 0.0
    %801 = vmatprep.subr.mxu0 0.0
    %802 = vmatpush1.msra.mxu0 0.0
    %803 = vmatprep.subr.mxu0 0.0
    %804 = vmatpush1.msra.mxu0 0.0
    %805 = vmatprep.subr.mxu0 0.0
    %806 = vmatpush1.msra.mxu0 0.0
    %807 = vmatprep.subr.mxu0 0.0
    %808 = vmatpush1.msra.mxu0 0.0
    %809 = vmatprep.subr.mxu0 0.0
    %810 = vmatpush1.msra.mxu0 0.0
    %811 = vmatprep.subr.mxu0 0.0
    %812 = vmatpush1.msra.mxu0 0.0
    %813 = vmatprep.subr.mxu0 0.0
    %814 = vmatpush1.msra.mxu0 0.0
    %815 = vmatprep.subr.mxu0 0.0
    %816 = vmatpush1.msra.mxu0 0.0
    %817 = vmatprep.subr.mxu0 0.0
    %818 = vmatpush1.msra.mxu0 0.0
    %819 = vmatprep.subr.mxu0 0.0
    %820 = vmatpush1.msra.mxu0 0.0
    %821 = vmatprep.subr.mxu0 0.0
    %822 = vmatpush1.msra.mxu0 0.0
    %823 = vmatprep.subr.mxu0 0.0
    %824 = vmatpush1.msra.mxu0 %v793
    %825 = vmatprep.subr.mxu0 0.0
    %826 = vmatpush1.msra.mxu0 %v790
    %827 = vmatprep.subr.mxu0 0.0
    %828 = vmatpush2.msra.mxu0 0.0
    %829 = vmatprep.subr.mxu0 0.0
    %830 = vmatpush2.msra.mxu0 0.0
    %831 = vmatprep.subr.mxu0 0.0
    %832 = vmatpush2.msra.mxu0 0.0
    %833 = vmatprep.subr.mxu0 0.0
    %834 = vmatpush2.msra.mxu0 0.0
    %835 = vmatprep.subr.mxu0 0.0
    %836 = vmatpush2.msra.mxu0 0.0
    %837 = vmatprep.subr.mxu0 0.0
    %838 = vmatpush2.msra.mxu0 0.0
    %839 = vmatprep.subr.mxu0 0.0
    %840 = vmatpush2.msra.mxu0 0.0
    %841 = vmatprep.subr.mxu0 0.0
    %842 = vmatpush2.msra.mxu0 0.0
    %843 = vmatprep.subr.mxu0 0.0
    %844 = vmatpush2.msra.mxu0 0.0
    %845 = vmatprep.subr.mxu0 0.0
    %846 = vmatpush2.msra.mxu0 0.0
    %847 = vmatprep.subr.mxu0 0.0
    %848 = vmatpush2.msra.mxu0 0.0
    %849 = vmatprep.subr.mxu0 0.0
    %850 = vmatpush2.msra.mxu0 0.0
    %851 = vmatprep.subr.mxu0 0.0
    %852 = vmatpush2.msra.mxu0 0.0
    %853 = vmatprep.subr.mxu0 0.0
    %854 = vmatpush2.msra.mxu0 0.0
    %855 = vmatprep.subr.mxu0 0.0
    %856 = vmatpush2.msra.mxu0 0.0
    %857 = vmatprep.subr.mxu0 0.0
    %858 = vmatpush2.msra.mxu0 0.0
    %859 = vmatprep.mubr.f32.mxu0 0.0
    %860 = vmatmul.mubr.f32.gmra.mxu0 %v304
    %v861 = vpop.f32.mrf.mxu0
    %v862 = vadd.f32 0.0, %v861
    %v863 = vpop.f32.mrf.mxu0
    %864 = vmatprep.mubr.f32.mxu0 0.0
    %865 = vmatmul.mubr.f32.gmra.mxu0 %v307
    %v866 = vpop.f32.mrf.mxu0
    %v867 = vadd.f32 0.0, %v866
    %v868 = vpop.f32.mrf.mxu0
    %869 = vmatprep.mubr.f32.mxu0 0.0
    %870 = vmatmul.mubr.f32.gmra.mxu0 %v310
    %v871 = vpop.f32.mrf.mxu0
    %v872 = vadd.f32 0.0, %v871
    %v873 = vpop.f32.mrf.mxu0
    %874 = vmatprep.mubr.f32.mxu0 0.0
    %875 = vmatmul.mubr.f32.gmra.mxu0 %v313
    %v876 = vpop.f32.mrf.mxu0
    %v877 = vadd.f32 0.0, %v876
    %v878 = vpop.f32.mrf.mxu0
    %879 = vmatprep.mubr.f32.mxu0 0.0
    %880 = vmatmul.mubr.f32.gmra.mxu0 %v316
    %v881 = vpop.f32.mrf.mxu0
    %v882 = vadd.f32 0.0, %v881
    %v883 = vpop.f32.mrf.mxu0
    %884 = vdwg.mxu0
    %887 = vrot.lane.b32.xlu0 %v862, 96
    %v888 = vpop.permute.xlu0 %887
    %889 = vrot.lane.b32.xlu0 %v867, 96
    %v890 = vpop.permute.xlu0 %889
    %v893 = vadd.f32 %v161, %v888
    %v894 = vadd.f32 %v166, %v890
    %v895 = vxor.u32 %v893, 2147483648
    %v896 = vxor.u32 %v894, 2147483648
    %v897 = vmul.f32 %v895, 1.442695
    %v898 = vpow.pop %v897
    %v899 = vmul.f32 %v896, 1.442695
    %v900 = vpow.pop %v899
    %v901 = vadd.f32 %v898, 1.0
    %v902 = vadd.f32 %v900, 1.0
    %v903 = vrcp.pop %v901
    %v904 = vmul.f32 1.0, %v903
    %v905 = vrcp.pop %v902
    %v906 = vmul.f32 1.0, %v905
    %v907 = vadd.f32 %v862, 0.0
    %v908 = vadd.f32 %v867, 0.0
    %v909 = vmul.f32 %v904, %v862
    %v910 = vmul.f32 %v906, %v867
    %v911 = vadd.f32 %v909, 0.0
    %v912 = vadd.f32 %v910, 0.0
    %v914 = vrot.slane %v867, 1
    %v915 = vrot.slane %v872, 1
    %v916 = vsel %vm441, %v914, %v915
    %917 = vrot.lane.b32.xlu0 %v916, 96
    %v918 = vpop.permute.xlu0 %917
    %919 = vrot.lane.b32.xlu0 %v915, 96
    %v920 = vpop.permute.xlu0 %919
    %v923 = vadd.f32 %v161, %v918
    %v924 = vadd.f32 %v166, %v920
    %v925 = vxor.u32 %v923, 2147483648
    %v926 = vxor.u32 %v924, 2147483648
    %v927 = vmul.f32 %v925, 1.442695
    %v928 = vpow.pop %v927
    %v929 = vmul.f32 %v926, 1.442695
    %v930 = vpow.pop %v929
    %v931 = vadd.f32 %v928, 1.0
    %v932 = vadd.f32 %v930, 1.0
    %v933 = vrcp.pop %v931
    %v934 = vmul.f32 1.0, %v933
    %v935 = vrcp.pop %v932
    %v936 = vmul.f32 1.0, %v935
    %v939 = vadd.f32 %v907, %v916
    %v940 = vadd.f32 %v908, %v915
    %v941 = vmul.f32 %v934, %v916
    %v942 = vmul.f32 %v936, %v915
    %v943 = vadd.f32 %v911, %v941
    %v944 = vadd.f32 %v912, %v942
    %v946 = vrot.slane %v872, 2
    %v947 = vrot.slane %v877, 2
    %v948 = vsel %vm474, %v946, %v947
    %949 = vrot.lane.b32.xlu0 %v948, 96
    %v950 = vpop.permute.xlu0 %949
    %951 = vrot.lane.b32.xlu0 %v947, 96
    %v952 = vpop.permute.xlu0 %951
    %v955 = vadd.f32 %v161, %v950
    %v956 = vadd.f32 %v166, %v952
    %v957 = vxor.u32 %v955, 2147483648
    %v958 = vxor.u32 %v956, 2147483648
    %v959 = vmul.f32 %v957, 1.442695
    %v960 = vpow.pop %v959
    %v961 = vmul.f32 %v958, 1.442695
    %v962 = vpow.pop %v961
    %v963 = vadd.f32 %v960, 1.0
    %v964 = vadd.f32 %v962, 1.0
    %v965 = vrcp.pop %v963
    %v966 = vmul.f32 1.0, %v965
    %v967 = vrcp.pop %v964
    %v968 = vmul.f32 1.0, %v967
    %v971 = vadd.f32 %v939, %v948
    %v972 = vadd.f32 %v940, %v947
    %v973 = vmul.f32 %v966, %v948
    %v974 = vmul.f32 %v968, %v947
    %v975 = vadd.f32 %v943, %v973
    %v976 = vadd.f32 %v944, %v974
    %v978 = vrot.slane %v877, 3
    %v979 = vrot.slane %v882, 3
    %v980 = vsel %vm507, %v978, %v979
    %981 = vrot.lane.b32.xlu0 %v980, 96
    %v982 = vpop.permute.xlu0 %981
    %983 = vrot.lane.b32.xlu0 %v979, 96
    %v984 = vpop.permute.xlu0 %983
    %v987 = vadd.f32 %v161, %v982
    %v988 = vadd.f32 %v166, %v984
    %v989 = vxor.u32 %v987, 2147483648
    %v990 = vxor.u32 %v988, 2147483648
    %v991 = vmul.f32 %v989, 1.442695
    %v992 = vpow.pop %v991
    %v993 = vmul.f32 %v990, 1.442695
    %v994 = vpow.pop %v993
    %v995 = vadd.f32 %v992, 1.0
    %v996 = vadd.f32 %v994, 1.0
    %v997 = vrcp.pop %v995
    %v998 = vmul.f32 1.0, %v997
    %v999 = vrcp.pop %v996
    %v1000 = vmul.f32 1.0, %v999
    %v1003 = vadd.f32 %v971, %v980
    %v1004 = vadd.f32 %v972, %v979
    %v1005 = vmul.f32 %v998, %v980
    %v1006 = vmul.f32 %v1000, %v979
    %v1007 = vadd.f32 %v975, %v1005
    %v1008 = vadd.f32 %v976, %v1006
    %v1011 = vrot.slane %v1007, 7
    %v1012 = vrot.slane %v1008, 7
    %v1013 = vsel %vm318, %v1011, %v1012
    %v1015 = vsel %vm318, %v1004, %v1011
    %v1017 = vsel %vm87, %v1003, 0
    %v1020 = vsel %vm87, %v1015, 0
    %v1022 = vsel %vm87, %v1013, 0
    %1024 = vmatprep.subr.mxu0 0.0
    %1025 = vmatpush1.msra.mxu0 0.0
    %1026 = vmatprep.subr.mxu0 0.0
    %1027 = vmatpush1.msra.mxu0 0.0
    %1028 = vmatprep.subr.mxu0 0.0
    %1029 = vmatpush1.msra.mxu0 0.0
    %1030 = vmatprep.subr.mxu0 0.0
    %1031 = vmatpush1.msra.mxu0 0.0
    %1032 = vmatprep.subr.mxu0 0.0
    %1033 = vmatpush1.msra.mxu0 0.0
    %1034 = vmatprep.subr.mxu0 0.0
    %1035 = vmatpush1.msra.mxu0 0.0
    %1036 = vmatprep.subr.mxu0 0.0
    %1037 = vmatpush1.msra.mxu0 0.0
    %1038 = vmatprep.subr.mxu0 0.0
    %1039 = vmatpush1.msra.mxu0 0.0
    %1040 = vmatprep.subr.mxu0 0.0
    %1041 = vmatpush1.msra.mxu0 0.0
    %1042 = vmatprep.subr.mxu0 0.0
    %1043 = vmatpush1.msra.mxu0 0.0
    %1044 = vmatprep.subr.mxu0 0.0
    %1045 = vmatpush1.msra.mxu0 0.0
    %1046 = vmatprep.subr.mxu0 0.0
    %1047 = vmatpush1.msra.mxu0 0.0
    %1048 = vmatprep.subr.mxu0 0.0
    %1049 = vmatpush1.msra.mxu0 %v80
    %1050 = vmatprep.subr.mxu0 0.0
    %1051 = vmatpush1.msra.mxu0 %v79
    %1052 = vmatprep.subr.mxu0 0.0
    %1053 = vmatpush1.msra.mxu0 %v78
    %1054 = vmatprep.subr.mxu0 0.0
    %1055 = vmatpush1.msra.mxu0 %v77
    %1056 = vmatprep.subr.mxu0 0.0
    %1057 = vmatpush2.msra.mxu0 0.0
    %1058 = vmatprep.subr.mxu0 0.0
    %1059 = vmatpush2.msra.mxu0 0.0
    %1060 = vmatprep.subr.mxu0 0.0
    %1061 = vmatpush2.msra.mxu0 0.0
    %1062 = vmatprep.subr.mxu0 0.0
    %1063 = vmatpush2.msra.mxu0 0.0
    %1064 = vmatprep.subr.mxu0 0.0
    %1065 = vmatpush2.msra.mxu0 0.0
    %1066 = vmatprep.subr.mxu0 0.0
    %1067 = vmatpush2.msra.mxu0 0.0
    %1068 = vmatprep.subr.mxu0 0.0
    %1069 = vmatpush2.msra.mxu0 0.0
    %1070 = vmatprep.subr.mxu0 0.0
    %1071 = vmatpush2.msra.mxu0 0.0
    %1072 = vmatprep.subr.mxu0 0.0
    %1073 = vmatpush2.msra.mxu0 0.0
    %1074 = vmatprep.subr.mxu0 0.0
    %1075 = vmatpush2.msra.mxu0 0.0
    %1076 = vmatprep.subr.mxu0 0.0
    %1077 = vmatpush2.msra.mxu0 0.0
    %1078 = vmatprep.subr.mxu0 0.0
    %1079 = vmatpush2.msra.mxu0 0.0
    %1080 = vmatprep.subr.mxu0 0.0
    %1081 = vmatpush2.msra.mxu0 0.0
    %1082 = vmatprep.subr.mxu0 0.0
    %1083 = vmatpush2.msra.mxu0 0.0
    %1084 = vmatprep.subr.mxu0 0.0
    %1085 = vmatpush2.msra.mxu0 0.0
    %1086 = vmatprep.subr.mxu0 0.0
    %1087 = vmatpush2.msra.mxu0 0.0
    %1088 = vmatprep.mubr.f32.mxu0 0.0
    %1089 = vmatmul.mubr.f32.gmra.mxu0 %v1017
    %v1090 = vpop.f32.mrf.mxu0
    %v1091 = vadd.f32 0.0, %v1090
    %v1092 = vpop.f32.mrf.mxu0
    %1093 = vmatprep.mubr.f32.mxu0 0.0
    %1094 = vmatmul.mubr.f32.gmra.mxu0 %v1020
    %v1095 = vpop.f32.mrf.mxu0
    %v1096 = vadd.f32 0.0, %v1095
    %v1097 = vpop.f32.mrf.mxu0
    %1098 = vmatprep.mubr.f32.mxu0 0.0
    %1099 = vmatmul.mubr.f32.gmra.mxu0 %v1022
    %v1100 = vpop.f32.mrf.mxu0
    %v1101 = vadd.f32 0.0, %v1100
    %v1102 = vpop.f32.mrf.mxu0
    %1103 = vdwg.mxu0
    %1106 = vrot.lane.b32.xlu0 %v1091, 32
    %v1107 = vpop.permute.xlu0 %1106
    %1108 = vrot.lane.b32.xlu0 %v1096, 32
    %v1109 = vpop.permute.xlu0 %1108
    %v1112 = vadd.f32 %v161, %v1107
    %v1113 = vadd.f32 %v166, %v1109
    %v1114 = vxor.u32 %v1112, 2147483648
    %v1115 = vxor.u32 %v1113, 2147483648
    %v1116 = vmul.f32 %v1114, 1.442695
    %v1117 = vpow.pop %v1116
    %v1118 = vmul.f32 %v1115, 1.442695
    %v1119 = vpow.pop %v1118
    %v1120 = vadd.f32 %v1117, 1.0
    %v1121 = vadd.f32 %v1119, 1.0
    %v1122 = vrcp.pop %v1120
    %v1123 = vmul.f32 1.0, %v1122
    %v1124 = vrcp.pop %v1121
    %v1125 = vmul.f32 1.0, %v1124
    %v1127 = vrot.slane %v1096, 1
    %v1128 = vrot.slane %v1101, 1
    %v1129 = vsel %vm441, %v1127, %v1128
    %1130 = vrot.lane.b32.xlu0 %v1129, 32
    %v1131 = vpop.permute.xlu0 %1130
    %1132 = vrot.lane.b32.xlu0 %v1128, 32
    %v1133 = vpop.permute.xlu0 %1132
    %v1136 = vadd.f32 %v161, %v1131
    %v1137 = vadd.f32 %v166, %v1133
    %v1138 = vtanh.pop %v1136
    %v1139 = vtanh.pop %v1137
    %v1140 = vsub.f32 1.0, %v1123
    %v1141 = vsub.f32 1.0, %v1125
    %1143 = vrot.lane.b32.xlu0 %v1003, 32
    %v1144 = vpop.permute.xlu0 %1143
    %1145 = vrot.lane.b32.xlu0 %v1004, 32
    %v1146 = vpop.permute.xlu0 %1145
    %v1149 = vmul.f32 %v1140, %v1144
    %v1150 = vmul.f32 %v1141, %v1146
    %1153 = vrot.lane.b32.xlu0 %v1138, 96
    %v1154 = vpop.permute.xlu0 %1153
    %1155 = vrot.lane.b32.xlu0 %v1139, 96
    %v1156 = vpop.permute.xlu0 %1155
    %v1159 = vmul.f32 %v1123, %v1154
    %v1160 = vmul.f32 %v1125, %v1156
    %v1161 = vadd.f32 %v1149, %v1159
    %v1162 = vadd.f32 %v1150, %v1160
    %v1163 = vmul.f32 %v1161, %v196
    %v1164 = vmul.f32 %v1162, %v201
    %1167 = vrot.lane.b32.xlu0 %v1163, 96
    %v1168 = vpop.permute.xlu0 %1167
    %1169 = vrot.lane.b32.xlu0 %v1164, 96
    %v1170 = vpop.permute.xlu0 %1169
    %v1173 = vsel %vm302, %v65, 0
    %v1175 = vsel %vm318, %v1170, 0
    %1177 = vmatprep.subr.mxu0 0.0
    %1178 = vmatpush1.msra.mxu0 0.0
    %1179 = vmatprep.subr.mxu0 0.0
    %1180 = vmatpush1.msra.mxu0 0.0
    %1181 = vmatprep.subr.mxu0 0.0
    %1182 = vmatpush1.msra.mxu0 0.0
    %1183 = vmatprep.subr.mxu0 0.0
    %1184 = vmatpush1.msra.mxu0 0.0
    %1185 = vmatprep.subr.mxu0 0.0
    %1186 = vmatpush1.msra.mxu0 0.0
    %1187 = vmatprep.subr.mxu0 0.0
    %1188 = vmatpush1.msra.mxu0 0.0
    %1189 = vmatprep.subr.mxu0 0.0
    %1190 = vmatpush1.msra.mxu0 0.0
    %1191 = vmatprep.subr.mxu0 0.0
    %1192 = vmatpush1.msra.mxu0 0.0
    %1193 = vmatprep.subr.mxu0 0.0
    %1194 = vmatpush1.msra.mxu0 0.0
    %1195 = vmatprep.subr.mxu0 0.0
    %1196 = vmatpush1.msra.mxu0 0.0
    %1197 = vmatprep.subr.mxu0 0.0
    %1198 = vmatpush1.msra.mxu0 0.0
    %1199 = vmatprep.subr.mxu0 0.0
    %1200 = vmatpush1.msra.mxu0 0.0
    %1201 = vmatprep.subr.mxu0 0.0
    %1202 = vmatpush1.msra.mxu0 0.0
    %1203 = vmatprep.subr.mxu0 0.0
    %1204 = vmatpush1.msra.mxu0 0.0
    %1205 = vmatprep.subr.mxu0 0.0
    %1206 = vmatpush1.msra.mxu0 %v1175
    %1207 = vmatprep.subr.mxu0 0.0
    %1208 = vmatpush1.msra.mxu0 %v1168
    %1209 = vmatprep.subr.mxu0 0.0
    %1210 = vmatpush2.msra.mxu0 0.0
    %1211 = vmatprep.subr.mxu0 0.0
    %1212 = vmatpush2.msra.mxu0 0.0
    %1213 = vmatprep.subr.mxu0 0.0
    %1214 = vmatpush2.msra.mxu0 0.0
    %1215 = vmatprep.subr.mxu0 0.0
    %1216 = vmatpush2.msra.mxu0 0.0
    %1217 = vmatprep.subr.mxu0 0.0
    %1218 = vmatpush2.msra.mxu0 0.0
    %1219 = vmatprep.subr.mxu0 0.0
    %1220 = vmatpush2.msra.mxu0 0.0
    %1221 = vmatprep.subr.mxu0 0.0
    %1222 = vmatpush2.msra.mxu0 0.0
    %1223 = vmatprep.subr.mxu0 0.0
    %1224 = vmatpush2.msra.mxu0 0.0
    %1225 = vmatprep.subr.mxu0 0.0
    %1226 = vmatpush2.msra.mxu0 0.0
    %1227 = vmatprep.subr.mxu0 0.0
    %1228 = vmatpush2.msra.mxu0 0.0
    %1229 = vmatprep.subr.mxu0 0.0
    %1230 = vmatpush2.msra.mxu0 0.0
    %1231 = vmatprep.subr.mxu0 0.0
    %1232 = vmatpush2.msra.mxu0 0.0
    %1233 = vmatprep.subr.mxu0 0.0
    %1234 = vmatpush2.msra.mxu0 0.0
    %1235 = vmatprep.subr.mxu0 0.0
    %1236 = vmatpush2.msra.mxu0 0.0
    %1237 = vmatprep.subr.mxu0 0.0
    %1238 = vmatpush2.msra.mxu0 0.0
    %1239 = vmatprep.subr.mxu0 0.0
    %1240 = vmatpush2.msra.mxu0 0.0
    %1241 = vmatprep.mubr.f32.mxu0 0.0
    %1242 = vmatmul.mubr.f32.gmra.mxu0 %v1173
    %v1243 = vpop.f32.mrf.mxu0
    %v1244 = vadd.f32 0.0, %v1243
    %v1245 = vpop.f32.mrf.mxu0
    %1246 = vdwg.mxu0
    %vm1247 = vcmask 259072
    %1248 = vst.msk [vmem:[#allocation7] sm:$0x3f] %vm1247, %v1244
    // Predicated region
    $region42: #{tpu_custom_call.1} parent=1 // pred_check
      _
    $region43: #{tpu_custom_call.1} parent=1 // pred_check_branch
      %1250 = sbr.rel (0) target = $region45
    $region44: #{tpu_custom_call.1} parent=1 // pred_region
      %s1252 = ssub.s32 128, 128
      %1253 = vsyncadd [#allocation4], %s1252
      %s1255 = sshll.u32 [#allocation7], 4
      %s1256 = int_to_ptr.vmem [resolvable:$true] %s1255
      %1258 = dma.vmem_to_hbm [thread:$0]  %s1256, 128, %s8, [#allocation4]
    $region45: #{tpu_custom_call.1} parent=1 // pred_fallthru
      _
    // Predicated region
    $region46: #{tpu_custom_call.1} parent=1 // pred_check
      _
    $region47: #{tpu_custom_call.1} parent=1 // pred_check_branch
      %1260 = sbr.rel (0) target = $region49
    $region48: #{tpu_custom_call.1} parent=1 // pred_region
      %1261 = dma.done [#allocation4], 128
    $region49: #{tpu_custom_call.1} parent=1 // pred_fallthru
      _
    %1262 = vsyncpa [#allocation3], 1
    %1263 = vsyncpa [#allocation6], 1
    %1264 = vsyncpa [#allocation4], 1

</llo_original>
